<compile_context>
chip_gen: v7x
topology: tpu7x:2x2x1
jax: 0.10.0
libtpu: 0.0.40
codegen_flags: <defaults>
</compile_context>

<pallas_src>
import jax
import jax.numpy as jnp
from jax.experimental import pallas as pl
from jax.experimental.pallas import tpu as pltpu


_MEAN = jnp.array([0.485, 0.456, 0.406], dtype=jnp.float32)
_STD = jnp.array([0.229, 0.224, 0.225], dtype=jnp.float32)

# torchvision vgg19().features, layer by layer, up to index 31 (relu5_2).
_VGG19_LAYERS = [
    ("conv", (3, 64)), ("relu", None), ("conv", (64, 64)), ("relu", None),       # 0-3
    ("pool", None),                                                              # 4
    ("conv", (64, 128)), ("relu", None), ("conv", (128, 128)), ("relu", None),   # 5-8
    ("pool", None),                                                              # 9
    ("conv", (128, 256)), ("relu", None), ("conv", (256, 256)), ("relu", None),  # 10-13
    ("conv", (256, 256)), ("relu", None), ("conv", (256, 256)), ("relu", None),  # 14-17
    ("pool", None),                                                              # 18
    ("conv", (256, 512)), ("relu", None), ("conv", (512, 512)), ("relu", None),  # 19-22
    ("conv", (512, 512)), ("relu", None), ("conv", (512, 512)), ("relu", None),  # 23-26
    ("pool", None),                                                              # 27
    ("conv", (512, 512)), ("relu", None), ("conv", (512, 512)), ("relu", None),  # 28-31
]
_TAPS = {3: 1.0, 8: 0.75, 13: 0.5, 22: 0.5, 31: 1.0}


# ---------------------------------------------------------------------------
# Kernel 1: input preprocessing  out = x * a + b   (per-channel affine)
#   folds (x + 1)/2 and (x - mean)/std into one scale/shift, applied lane-dense
#   on a (B*H, W*3) view with the coefficient row tiled to W*3 lanes.
# ---------------------------------------------------------------------------
def _preprocess_kernel(x_ref, a_ref, b_ref, o_ref):
    o_ref[...] = x_ref[...] * a_ref[...] + b_ref[...]


def preprocess(x_nhwc):
    B, H, W, C = x_nhwc.shape
    a = 0.5 / _STD
    b = (0.5 - _MEAN) / _STD
    a_row = jnp.tile(a, W).reshape(1, W * C)
    b_row = jnp.tile(b, W).reshape(1, W * C)
    x2 = x_nhwc.astype(jnp.float32).reshape(B * H, W * C)
    out = pl.pallas_call(
        _preprocess_kernel,
        out_shape=jax.ShapeDtypeStruct((B * H, W * C), jnp.float32),
        in_specs=[pl.BlockSpec(memory_space=pltpu.VMEM)] * 3,
        out_specs=pl.BlockSpec(memory_space=pltpu.VMEM),
    )(x2, a_row, b_row)
    return out.reshape(B, H, W, C)


# ---------------------------------------------------------------------------
# Kernel 2: fused (im2col-matmul + bias + ReLU)  ==  Conv2d(3x3, pad=1) + ReLU
# ---------------------------------------------------------------------------
def _conv_mm_kernel(p_ref, w_ref, b_ref, o_ref):
    acc = jnp.dot(p_ref[...], w_ref[...], preferred_element_type=jnp.float32)
    acc = acc + b_ref[...]                       # (1, Cout) broadcasts over rows
    o_ref[...] = jnp.maximum(acc, 0.0).astype(o_ref.dtype)


def _matmul_bias_relu(p2d, wmat, b2d):
    M, K = p2d.shape
    Cout = wmat.shape[1]
    tm = 256 if M % 256 == 0 else M              # tm either divides M exactly or is full M
    return pl.pallas_call(
        _conv_mm_kernel,
        out_shape=jax.ShapeDtypeStruct((M, Cout), jnp.float32),
        grid_spec=pltpu.PrefetchScalarGridSpec(
            num_scalar_prefetch=0,
            grid=(M // tm,),
            in_specs=[
                pl.BlockSpec((tm, K), lambda i: (i, 0)),      # patch rows: pipelined
                pl.BlockSpec((K, Cout), lambda i: (0, 0)),    # weights: stay resident
                pl.BlockSpec((1, Cout), lambda i: (0, 0)),    # bias: stays resident
            ],
            out_specs=pl.BlockSpec((tm, Cout), lambda i: (i, 0)),
        ),
        compiler_params=pltpu.CompilerParams(
            dimension_semantics=("parallel",),
            vmem_limit_bytes=48 * 1024 * 1024,   # conv5 weight block ~9.4 MiB (double-buffered)
        ),
    )(p2d, wmat, b2d)


def conv3x3_relu(x, w, b):
    """x: (B,H,W,Cin) f32, w: (3,3,Cin,Cout) HWIO, b: (Cout,). Same-padded 3x3 conv + ReLU."""
    B, H, W, Cin = x.shape
    Cout = w.shape[-1]
    xp = jnp.pad(x, ((0, 0), (1, 1), (1, 1), (0, 0)))
    # im2col is pure layout plumbing in the wrapper; tap order (dy, dx) matches w.reshape below.
    patches = jnp.concatenate(
        [xp[:, dy:dy + H, dx:dx + W, :] for dy in range(3) for dx in range(3)],
        axis=-1)                                          # (B, H, W, 9*Cin)
    p2d = patches.reshape(B * H * W, 9 * Cin)
    wmat = w.reshape(9 * Cin, Cout)
    out2d = _matmul_bias_relu(p2d, wmat, b.reshape(1, Cout))
    return out2d.reshape(B, H, W, Cout)


# ---------------------------------------------------------------------------
# Kernel 3: MaxPool2d(kernel=2, stride=2)
#   wrapper folds the (w, w+1) pixel pair into the lane dim -> kernel only does
#   a row max and a static lane-half max (no strided/reshape ops in-kernel).
# ---------------------------------------------------------------------------
def _maxpool_kernel(x_ref, o_ref):
    # x_ref: (2, Wo, 2*C)  two input rows;  o_ref: (Wo, C)
    c = o_ref.shape[-1]
    r = jnp.maximum(x_ref[0], x_ref[1])
    o_ref[...] = jnp.maximum(r[:, :c], r[:, c:])


def maxpool2x2(x):
    B, H, W, C = x.shape
    Ho, Wo = H // 2, W // 2
    xr = x.reshape(B, H, Wo, 2 * C)
    return pl.pallas_call(
        _maxpool_kernel,
        out_shape=jax.ShapeDtypeStruct((B, Ho, Wo, C), x.dtype),
        grid_spec=pltpu.PrefetchScalarGridSpec(
            num_scalar_prefetch=0,
            grid=(B, Ho),
            in_specs=[pl.BlockSpec((None, 2, Wo, 2 * C), lambda b, h: (b, h, 0, 0))],
            out_specs=pl.BlockSpec((None, None, Wo, C), lambda b, h: (b, h, 0, 0)),
        ),
        compiler_params=pltpu.CompilerParams(
            dimension_semantics=("parallel", "parallel")),
    )(xr)


# ---------------------------------------------------------------------------
# Kernel 4: mean(|a - b|) as a gridded reduction with a resident accumulator
# ---------------------------------------------------------------------------
def _l1_sum_kernel(a_ref, b_ref, o_ref):
    @pl.when(pl.program_id(0) == 0)
    def _():
        o_ref[...] = jnp.zeros_like(o_ref)
    d = jnp.abs(a_ref[...].astype(jnp.float32) - b_ref[...].astype(jnp.float32))
    o_ref[...] += jnp.sum(d, keepdims=True)


def l1_mean(a, b, tile_rows=256):
    c = a.shape[-1]
    a2 = a.reshape(-1, c)
    b2 = b.reshape(-1, c)
    R = a2.shape[0]
    tr = tile_rows if R % tile_rows == 0 else R
    s = pl.pallas_call(
        _l1_sum_kernel,
        out_shape=jax.ShapeDtypeStruct((1, 1), jnp.float32),
        grid_spec=pltpu.PrefetchScalarGridSpec(
            num_scalar_prefetch=0,
            grid=(R // tr,),
            in_specs=[pl.BlockSpec((tr, c), lambda i: (i, 0)),
                      pl.BlockSpec((tr, c), lambda i: (i, 0))],
            out_specs=pl.BlockSpec((1, 1), lambda i: (0, 0)),
        ),
        compiler_params=pltpu.CompilerParams(dimension_semantics=("arbitrary",)),
    )(a2, b2)
    return s[0, 0] / a.size


# ---------------------------------------------------------------------------
# Parameters + full forward
# ---------------------------------------------------------------------------
def init_vgg19_params(key):
    """Deterministic He-init stand-ins for the pretrained VGG19 conv weights (HWIO)."""
    params = []
    for kind, arg in _VGG19_LAYERS:
        if kind != "conv":
            continue
        cin, cout = arg
        key, kw, kb = jax.random.split(key, 3)
        std = (2.0 / (9.0 * cin)) ** 0.5
        w = jax.random.normal(kw, (3, 3, cin, cout), jnp.float32) * std
        bias = jax.random.normal(kb, (cout,), jnp.float32) * 0.01
        params.append((w, bias))
    return params


def vgg_perceptual_loss(es, ta, params):
    """es, ta: (N, 3, H, W) NCHW in [-1, 1] — same interface as the PyTorch module."""
    N = es.shape[0]
    x = jnp.concatenate([es, ta], axis=0)            # run both through the network at once
    x = jnp.transpose(x, (0, 2, 3, 1))               # NCHW -> NHWC (channels on lanes)
    x = preprocess(x)

    loss = jnp.float32(0.0)
    conv_i = 0
    idx = 0
    while idx < len(_VGG19_LAYERS):
        kind, _ = _VGG19_LAYERS[idx]
        if kind == "conv":                           # Conv2d + the ReLU that always follows it
            w, b = params[conv_i]
            conv_i += 1
            x = conv3x3_relu(x, w, b)
            idx += 2
        else:                                        # MaxPool2d(2, 2)
            x = maxpool2x2(x)
            idx += 1
        tap = idx - 1
        if tap in _TAPS:
            es_f, ta_f = x[:N], x[N:]
            loss = loss + _TAPS[tap] * l1_mean(es_f, ta_f)
            if tap == 31:
                break
    return loss


# ---------------------------------------------------------------------------
# Pure-JAX reference matching the PyTorch forward
# ---------------------------------------------------------------------------
def vgg_perceptual_loss_ref(es, ta, params):
    def prep(x):
        x = jnp.transpose(x, (0, 2, 3, 1)).astype(jnp.float32)
        x = (x + 1.0) * 0.5
        return (x - _MEAN) / _STD

    def conv(x, w, b):
        y = jax.lax.conv_general_dilated(
            x, w, (1, 1), ((1, 1), (1, 1)),
            dimension_numbers=("NHWC", "HWIO", "NHWC"),
            precision=jax.lax.Precision.HIGHEST)
        return jnp.maximum(y + b, 0.0)

    def pool(x):
        return jax.lax.reduce_window(x, -jnp.inf, jax.lax.max,
                                     (1, 2, 2, 1), (1, 2, 2, 1), "VALID")

    e, t = prep(es), prep(ta)
    loss = 0.0
    conv_i = 0
    idx = 0
    while idx < len(_VGG19_LAYERS):
        kind, _ = _VGG19_LAYERS[idx]
        if kind == "conv":
            w, b = params[conv_i]
            conv_i += 1
            e, t = conv(e, w, b), conv(t, w, b)
            idx += 2
        else:
            e, t = pool(e), pool(t)
            idx += 1
        tap = idx - 1
        if tap in _TAPS:
            loss = loss + _TAPS[tap] * jnp.mean(jnp.abs(e - t))
            if tap == 31:
                break
    return loss


if __name__ == "__main__":
    key = jax.random.PRNGKey(0)
    kp, ke, kt = jax.random.split(key, 3)
    params = init_vgg19_params(kp)

    N, H, W = 2, 16, 16                      # small spatial size; true VGG19 channel widths
    es = jax.random.uniform(ke, (N, 3, H, W), jnp.float32, minval=-1.0, maxval=1.0)
    ta = jax.random.uniform(kt, (N, 3, H, W), jnp.float32, minval=-1.0, maxval=1.0)

    out = vgg_perceptual_loss(es, ta, params)
    out = jax.block_until_ready(out)

    ref = vgg_perceptual_loss_ref(es, ta, params)
    ref = jax.block_until_ready(ref)

    assert bool(jnp.isfinite(out)), out
    err = abs(float(out) - float(ref))
    assert err <= 2e-2 * abs(float(ref)) + 1e-3, (float(out), float(ref), err)
    print("KERNEL_OK")
</pallas_src>

<mosaic_0001>
module attributes {stable_mosaic.version = 11 : i64} {
  func.func @_preprocess_kernel(%arg0: memref<64x48xf32, #tpu.memory_space<vmem>>, %arg1: memref<1x48xf32, #tpu.memory_space<vmem>>, %arg2: memref<1x48xf32, #tpu.memory_space<vmem>>, %arg3: memref<64x48xf32, #tpu.memory_space<vmem>>) attributes {dimension_semantics = [], scalar_prefetch = 0 : i64, scratch_operands = 0 : i64, tpu.core_type = #tpu.core_type<tc>} {
    %c0 = arith.constant 0 : index
    %c0_0 = arith.constant 0 : index
    %0 = vector.load %arg0[%c0, %c0_0] : memref<64x48xf32, #tpu.memory_space<vmem>>, vector<64x48xf32>
    %c0_1 = arith.constant 0 : index
    %c0_2 = arith.constant 0 : index
    %1 = vector.load %arg1[%c0_1, %c0_2] : memref<1x48xf32, #tpu.memory_space<vmem>>, vector<1x48xf32>
    %2 = vector.broadcast %1 : vector<1x48xf32> to vector<64x48xf32>
    %3 = arith.mulf %0, %2 : vector<64x48xf32>
    %c0_3 = arith.constant 0 : index
    %c0_4 = arith.constant 0 : index
    %4 = vector.load %arg2[%c0_3, %c0_4] : memref<1x48xf32, #tpu.memory_space<vmem>>, vector<1x48xf32>
    %5 = vector.broadcast %4 : vector<1x48xf32> to vector<64x48xf32>
    %6 = arith.addf %3, %5 : vector<64x48xf32>
    %c0_5 = arith.constant 0 : index
    %c0_6 = arith.constant 0 : index
    %7 = vector.load %arg3[%c0_5, %c0_6] : memref<64x48xf32, #tpu.memory_space<vmem>>, vector<64x48xf32>
    tpu.vector_store %arg3[%c0_5, %c0_6], %6 {strides = array<i32>} : memref<64x48xf32, #tpu.memory_space<vmem>>, vector<64x48xf32>,
    return
  }
}

</mosaic_0001>

<llo_original>
// kernel: tpu_custom_call.1
$region0: #{tpu_custom_call.1}
  #allocation0 [shape = 'u32[]', space=smem, size = 0x4, offset = 0x4, fixed_abs, tag = 'smem constant byte address 0x4 - core index']
  #allocation1 [shape = 'u32[144,128]{1,0:T(1,128)}', space=vmem, size = 0x12000, scoped, tag = 'internal scratch']
  %s0 = inlined_call_operand.vmem [shape: f32[64,48], index: 0, kind: input, shape index: {}]
  %s1 = inlined_call_operand.vmem [shape: f32[1,48], index: 1, kind: input, shape index: {}]
  %s2 = inlined_call_operand.vmem [shape: f32[1,48], index: 2, kind: input, shape index: {}]
  %s3 = inlined_call_operand.vmem [shape: f32[64,48], index: 3, kind: output, shape index: {}]
  %s4 = sld [smem:[#allocation0]]
  $region22: #{tpu_custom_call.1} parent=0
    _
  %s6 = ssub.s32 1, %s4
  %s7 = scalar_select 0, %s6, %s4
  // Predicated region
  $region2: #{tpu_custom_call.1} parent=0 // pred_check
    _
  $region3: #{tpu_custom_call.1} parent=0 // pred_check_branch
    %9 = sbr.rel (0) target = $region5
  $region4: #{tpu_custom_call.1} parent=0 // pred_region
    _
  $region5: #{tpu_custom_call.1} parent=0 // pred_fallthru
    _
  // Predicated region
  $region6: #{tpu_custom_call.1} parent=0 // pred_check
    _
  $region7: #{tpu_custom_call.1} parent=0 // pred_check_branch
    %11 = sbr.rel (0) target = $region9
  $region8: #{tpu_custom_call.1} parent=0 // pred_region
    _
  $region9: #{tpu_custom_call.1} parent=0 // pred_fallthru
    _
  // Predicated region
  $region10: #{tpu_custom_call.1} parent=0 // pred_check
    _
  $region11: #{tpu_custom_call.1} parent=0 // pred_check_branch
    %13 = sbr.rel (0) target = $region13
  $region12: #{tpu_custom_call.1} parent=0 // pred_region
    _
  $region13: #{tpu_custom_call.1} parent=0 // pred_fallthru
    _
  %v14 = vld [vmem:[%s0] sm:$0xff]
  %v15 = vld [vmem:[%s0 + $0x8] sm:$0xff]
  %v16 = vld [vmem:[%s0 + $0x10] sm:$0xff]
  %v17 = vld [vmem:[%s0 + $0x18] sm:$0xff]
  %v18 = vld [vmem:[%s0 + $0x20] sm:$0xff]
  %v19 = vld [vmem:[%s0 + $0x28] sm:$0xff]
  %v20 = vld [vmem:[%s0 + $0x30] sm:$0xff]
  %v21 = vld [vmem:[%s0 + $0x38] sm:$0xff]
  %v22 = vld [vmem:[%s1] sm:$0x1]
  %v24 = vlaneseq
  %v25 = vshrl.u32 %v24, 7
  %v26 = vsub.s32 0, %v25
  %v27 = vrot.slane %v22, %v26
  %v29 = vmul.f32 %v14, %v27
  %v30 = vmul.f32 %v15, %v27
  %v31 = vmul.f32 %v16, %v27
  %v32 = vmul.f32 %v17, %v27
  %v33 = vmul.f32 %v18, %v27
  %v34 = vmul.f32 %v19, %v27
  %v35 = vmul.f32 %v20, %v27
  %v36 = vmul.f32 %v21, %v27
  %v37 = vld [vmem:[%s2] sm:$0x1]
  %v39 = vlaneseq
  %v40 = vshrl.u32 %v39, 7
  %v41 = vsub.s32 0, %v40
  %v42 = vrot.slane %v37, %v41
  %v44 = vadd.f32 %v29, %v42
  %v45 = vadd.f32 %v30, %v42
  %v46 = vadd.f32 %v31, %v42
  %v47 = vadd.f32 %v32, %v42
  %v48 = vadd.f32 %v33, %v42
  %v49 = vadd.f32 %v34, %v42
  %v50 = vadd.f32 %v35, %v42
  %v51 = vadd.f32 %v36, %v42
  %vm52 = vcmask 392192
  %53 = vst.msk [vmem:[%s3] sm:$0xff] %vm52, %v44
  %54 = vst.msk [vmem:[%s3 + $0x8] sm:$0xff] %vm52, %v45
  %55 = vst.msk [vmem:[%s3 + $0x10] sm:$0xff] %vm52, %v46
  %56 = vst.msk [vmem:[%s3 + $0x18] sm:$0xff] %vm52, %v47
  %57 = vst.msk [vmem:[%s3 + $0x20] sm:$0xff] %vm52, %v48
  %58 = vst.msk [vmem:[%s3 + $0x28] sm:$0xff] %vm52, %v49
  %59 = vst.msk [vmem:[%s3 + $0x30] sm:$0xff] %vm52, %v50
  %60 = vst.msk [vmem:[%s3 + $0x38] sm:$0xff] %vm52, %v51
  // Predicated region
  $region14: #{tpu_custom_call.1} parent=0 // pred_check
    _
  $region15: #{tpu_custom_call.1} parent=0 // pred_check_branch
    %62 = sbr.rel (0) target = $region17
  $region16: #{tpu_custom_call.1} parent=0 // pred_region
    _
  $region17: #{tpu_custom_call.1} parent=0 // pred_fallthru
    _
  // Predicated region
  $region18: #{tpu_custom_call.1} parent=0 // pred_check
    _
  $region19: #{tpu_custom_call.1} parent=0 // pred_check_branch
    %64 = sbr.rel (0) target = $region21
  $region20: #{tpu_custom_call.1} parent=0 // pred_region
    _
  $region21: #{tpu_custom_call.1} parent=0 // pred_fallthru
    _

</llo_original>
